<compile_context>
chip_gen: v7x
topology: tpu7x:2x2x1
jax: 0.10.0
libtpu: 0.0.40
codegen_flags: <defaults>
</compile_context>

<pallas_src>
import math
import jax
import jax.numpy as jnp
from jax.experimental import pallas as pl
from jax.experimental.pallas import tpu as pltpu


Z_STD_CLIP_MAX = 2.0
_LOG_2PI = math.log(2.0 * math.pi)


def _round_up(x, m):
    return ((x + m - 1) // m) * m


# ---------------------------------------------------------------------------
# Pallas kernel: fused IBSupervisedEncoder forward (one batch tile per step)
# ---------------------------------------------------------------------------
def ib_encoder_kernel(
    # batch-tiled inputs
    obs_ref,      # [TB, Dobs]  bf16  flattened image observation
    goal_ref,     # [TB, G]     bf16  goal_vector
    h_ref,        # [TB, H]     f32   rnn_hxs
    mask_ref,     # [TB, 1]     f32   masks
    eps_ref,      # [TB, Z]     f32   standard-normal noise (zeros => mean)
    # VMEM-resident parameters (constant index_map)
    wenc_ref,     # [Dobs, H]   bf16
    benc_ref,     # [1, H]      f32
    wih_ref,      # [H, 3H]     bf16  GRUCell input->hidden (r, z, n)
    bih_ref,      # [1, 3H]     f32
    whh_ref,      # [H, 3H]     bf16  GRUCell hidden->hidden (r, z, n)
    bhh_ref,      # [1, 3H]     f32
    wfc_h_ref,    # [H, 2Z]     bf16  fc12 weight, hidden part
    wfc_g_ref,    # [G, 2Z]     bf16  fc12 weight, goal part
    bfc_ref,      # [1, 2Z]     f32
    # outputs
    packed_ref,   # [TB, 4Z]  f32  (z_latent | log_prob | mu | std)
    hnew_ref,     # [TB, H]   f32  updated rnn_hxs (aliased onto h input)
):
    f32 = jnp.float32
    bf16 = jnp.bfloat16

    h_prev = h_ref[...]            # f32
    mask = mask_ref[...]           # f32, broadcasts over hidden dim
    eps = eps_ref[...]             # f32
    H = h_prev.shape[1]
    Z = eps.shape[1]

    # --- base model: Linear -> tanh  (bf16 operands, f32 accumulation) -----
    x = jnp.tanh(
        jnp.dot(obs_ref[...], wenc_ref[...], preferred_element_type=f32)
        + benc_ref[...]
    )

    # --- base model: masked GRU cell  h' = GRU(x, h * masks) ---------------
    # NOTE: the two GRU matmuls are intentionally NOT fused into a single
    # [x|h] @ [w_ih; w_hh] push: PyTorch GRUCell needs gh_n kept separate
    # (n = tanh(gx_n + r * gh_n)), so the summed fusion would change semantics.
    h_masked = h_prev * mask
    gx = jnp.dot(x.astype(bf16), wih_ref[...], preferred_element_type=f32) + bih_ref[...]
    gh = jnp.dot(h_masked.astype(bf16), whh_ref[...], preferred_element_type=f32) + bhh_ref[...]

    r = jax.nn.sigmoid(gx[:, 0:H] + gh[:, 0:H])
    zg = jax.nn.sigmoid(gx[:, H:2 * H] + gh[:, H:2 * H])
    n = jnp.tanh(gx[:, 2 * H:3 * H] + r * gh[:, 2 * H:3 * H])
    h_new = (1.0 - zg) * n + zg * h_masked

    # --- fc12 on cat([hid, goal_vector], dim=1) (split matmul, no concat) --
    concat_params = (
        jnp.dot(h_new.astype(bf16), wfc_h_ref[...], preferred_element_type=f32)
        + jnp.dot(goal_ref[...], wfc_g_ref[...], preferred_element_type=f32)
        + bfc_ref[...]
    )

    # --- mean / std split, softplus, clamp ----------------------------------
    # TODO(synk): utils.get_mean_std source unavailable; assume
    #             mu = first half, std = softplus(second half).
    mu = concat_params[:, 0:Z]
    raw_std = concat_params[:, Z:2 * Z]
    # single-branch stable softplus: max(x,0) + log1p(exp(-|x|))
    std = jnp.maximum(raw_std, 0.0) + jnp.log1p(jnp.exp(-jnp.abs(raw_std)))
    std = jnp.minimum(std, Z_STD_CLIP_MAX)  # torch.clamp(std, max=...)

    # --- Normal(mu, std): rsample / mean + per-dim log_prob -----------------
    # (z_latent - mu) / std == eps exactly, so skip the subtract + divide.
    z_latent = mu + std * eps
    log_prob = -0.5 * (eps * eps) - jnp.log(std) - 0.5 * _LOG_2PI

    # lane-packed output slab: one store stream instead of four 8-lane stores
    packed_ref[...] = jnp.concatenate([z_latent, log_prob, mu, std], axis=-1)
    hnew_ref[...] = h_new


# ---------------------------------------------------------------------------
# Wrapper
# ---------------------------------------------------------------------------
def ib_supervised_encoder_forward(obs_image, goal_vector, rnn_hxs, masks, eps,
                                  params, *, block_b=None):
    B = obs_image.shape[0]
    obs_flat = obs_image.reshape(B, -1)
    d_obs = obs_flat.shape[1]
    H = rnn_hxs.shape[1]
    G = goal_vector.shape[1]
    Z = eps.shape[1]

    # --- batch tile choice: keep double-buffered bf16 obs tiles well inside
    #     a ~16 MiB budget so the same tiling is safe on v7x's smaller VMEM.
    if block_b is None:
        budget = 16 * 1024 * 1024
        tb = budget // max(2 * 2 * d_obs, 1)          # 2 bufs x bf16 bytes/row
        tb = max(8, min(512, (tb // 8) * 8))
        block_b = int(min(tb, _round_up(B, 8)))
    Bp = _round_up(B, block_b)
    pad = Bp - B

    def pad_rows(a):
        return jnp.pad(a, ((0, pad), (0, 0))) if pad else a

    obs_bf = pad_rows(obs_flat.astype(jnp.bfloat16))
    goal_bf = pad_rows(goal_vector.astype(jnp.bfloat16))
    h_f32 = pad_rows(rnn_hxs.astype(jnp.float32))
    mask_f32 = pad_rows(masks.astype(jnp.float32))
    eps_f32 = pad_rows(eps.astype(jnp.float32))

    grid = (Bp // block_b,)

    def row_spec(n):
        return pl.BlockSpec((block_b, n), lambda i: (i, 0))

    def const_spec(shape):
        return pl.BlockSpec(shape, lambda i: (0, 0))

    in_specs = [
        row_spec(d_obs), row_spec(G), row_spec(H), row_spec(1), row_spec(Z),
        const_spec(params["w_enc"].shape), const_spec(params["b_enc"].shape),
        const_spec(params["w_ih"].shape), const_spec(params["b_ih"].shape),
        const_spec(params["w_hh"].shape), const_spec(params["b_hh"].shape),
        const_spec(params["w_fc_h"].shape), const_spec(params["w_fc_g"].shape),
        const_spec(params["b_fc"].shape),
    ]
    out_specs = (row_spec(4 * Z), row_spec(H))
    out_shapes = (
        jax.ShapeDtypeStruct((Bp, 4 * Z), jnp.float32),   # z | logp | mu | std
        jax.ShapeDtypeStruct((Bp, H), jnp.float32),       # new rnn_hxs
    )

    # explicit VMEM budget with headroom (v7x scoped default is smaller)
    param_bytes = sum(int(v.size) * v.dtype.itemsize for v in params.values())
    io_bytes = 2 * block_b * (2 * d_obs + 2 * G + 4 * H + 4 + 4 * Z) \
        + 2 * block_b * (4 * (4 * Z) + 4 * H)
    vmem_limit = int(min(100 * 2**20, max(16 * 2**20, 4 * (param_bytes + io_bytes))))

    packed, h_new = pl.pallas_call(
        ib_encoder_kernel,
        grid=grid,
        in_specs=in_specs,
        out_specs=out_specs,
        out_shape=out_shapes,
        input_output_aliases={2: 1},   # padded rnn_hxs buffer reused for h_new
        compiler_params=pltpu.CompilerParams(
            dimension_semantics=("parallel",),
            vmem_limit_bytes=vmem_limit,
        ),
    )(
        obs_bf, goal_bf, h_f32, mask_f32, eps_f32,
        params["w_enc"], params["b_enc"],
        params["w_ih"], params["b_ih"],
        params["w_hh"], params["b_hh"],
        params["w_fc_h"], params["w_fc_g"], params["b_fc"],
    )

    z_latent = packed[:B, 0:Z]
    z_log_prob = packed[:B, Z:2 * Z]
    mu = packed[:B, 2 * Z:3 * Z]
    std = packed[:B, 3 * Z:4 * Z]
    return z_latent, z_log_prob, mu, std, h_new[:B]


# ---------------------------------------------------------------------------
# Deterministic parameter init (synthetic; not a checkpoint load)
# Weights stored in bf16 (MXU-native), biases in f32.
# ---------------------------------------------------------------------------
def make_params(key, d_obs, hidden, goal_dims, z_dims):
    ks = jax.random.split(key, 5)
    gain = math.sqrt(2.0)

    def w(k, shape, fan_in):
        return ((gain / math.sqrt(fan_in)) *
                jax.random.normal(k, shape, jnp.float32)).astype(jnp.bfloat16)

    return {
        "w_enc": w(ks[0], (d_obs, hidden), d_obs),
        "b_enc": jnp.zeros((1, hidden), jnp.float32),
        "w_ih": w(ks[1], (hidden, 3 * hidden), hidden),
        "b_ih": jnp.zeros((1, 3 * hidden), jnp.float32),
        "w_hh": w(ks[2], (hidden, 3 * hidden), hidden),
        "b_hh": jnp.zeros((1, 3 * hidden), jnp.float32),
        "w_fc_h": w(ks[3], (hidden, 2 * z_dims), hidden + goal_dims),
        "w_fc_g": w(ks[4], (goal_dims, 2 * z_dims), hidden + goal_dims),
        "b_fc": jnp.zeros((1, 2 * z_dims), jnp.float32),
    }


if __name__ == "__main__":
    # small shapes consistent with the module
    B, C, HW = 2, 4, 16          # obs image [B, C, 16, 16] (NCHW)
    HIDDEN = 32                  # hidden_size == recurrent_hidden_state_size
    GOAL = 8                     # goal_vector_dims
    ZDIMS = 8                    # z_dims

    key = jax.random.PRNGKey(0)
    k_obs, k_goal, k_h, k_eps, k_par = jax.random.split(key, 5)

    obs_image = jax.random.normal(k_obs, (B, C, HW, HW), jnp.float32)
    goal_vector = jax.random.normal(k_goal, (B, GOAL), jnp.float32)
    rnn_hxs = jax.random.normal(k_h, (B, HIDDEN), jnp.float32)
    masks = jnp.ones((B, 1), jnp.float32)
    # do_z_sampling=True -> reparameterized sample; (zeros => gauss_dist.mean)
    eps = jax.random.normal(k_eps, (B, ZDIMS), jnp.float32)

    params = make_params(k_par, C * HW * HW, HIDDEN, GOAL, ZDIMS)

    outs = ib_supervised_encoder_forward(
        obs_image, goal_vector, rnn_hxs, masks, eps, params
    )
    outs = jax.block_until_ready(outs)
    z_latent, z_log_prob, mu, std, rnn_hxs_new = outs

    assert z_latent.shape == (B, ZDIMS)
    assert z_log_prob.shape == (B, ZDIMS)
    assert mu.shape == (B, ZDIMS) and std.shape == (B, ZDIMS)
    assert rnn_hxs_new.shape == (B, HIDDEN)
    assert bool(jnp.all(std > 0.0))
    assert bool(jnp.all(std <= Z_STD_CLIP_MAX + 1e-6))
    assert bool(jnp.all(jnp.isfinite(z_log_prob)))
    assert bool(jnp.all(jnp.isfinite(rnn_hxs_new)))

    print("KERNEL_OK")
</pallas_src>

<mosaic_0001>
module attributes {stable_mosaic.version = 11 : i64} {
  func.func @ib_encoder_kernel(%arg0: i32, %arg1: memref<8x1024xbf16, #tpu.memory_space<vmem>>, %arg2: memref<8x8xbf16, #tpu.memory_space<vmem>>, %arg3: memref<8x32xf32, #tpu.memory_space<vmem>>, %arg4: memref<8x1xf32, #tpu.memory_space<vmem>>, %arg5: memref<8x8xf32, #tpu.memory_space<vmem>>, %arg6: memref<1024x32xbf16, #tpu.memory_space<vmem>>, %arg7: memref<1x32xf32, #tpu.memory_space<vmem>>, %arg8: memref<32x96xbf16, #tpu.memory_space<vmem>>, %arg9: memref<1x96xf32, #tpu.memory_space<vmem>>, %arg10: memref<32x96xbf16, #tpu.memory_space<vmem>>, %arg11: memref<1x96xf32, #tpu.memory_space<vmem>>, %arg12: memref<32x16xbf16, #tpu.memory_space<vmem>>, %arg13: memref<8x16xbf16, #tpu.memory_space<vmem>>, %arg14: memref<1x16xf32, #tpu.memory_space<vmem>>, %arg15: memref<8x32xf32, #tpu.memory_space<vmem>>, %arg16: memref<8x32xf32, #tpu.memory_space<vmem>>) attributes {dimension_semantics = [#tpu.dimension_semantics<parallel>], iteration_bounds = array<i64: 1>, scalar_prefetch = 0 : i64, scratch_operands = 0 : i64, tpu.core_type = #tpu.core_type<tc>, window_params = [{transform_indices = @transform_0, window_bounds = array<i64: 8, 1024>}, {transform_indices = @transform_1, window_bounds = array<i64: 8, 8>}, {transform_indices = @transform_2, window_bounds = array<i64: 8, 32>}, {transform_indices = @transform_3, window_bounds = array<i64: 8, 1>}, {transform_indices = @transform_4, window_bounds = array<i64: 8, 8>}, {pipeline_mode = #tpu.pipeline_mode<synchronous>, transform_indices = @transform_5, window_bounds = array<i64: 1024, 32>}, {pipeline_mode = #tpu.pipeline_mode<synchronous>, transform_indices = @transform_6, window_bounds = array<i64: 1, 32>}, {pipeline_mode = #tpu.pipeline_mode<synchronous>, transform_indices = @transform_7, window_bounds = array<i64: 32, 96>}, {pipeline_mode = #tpu.pipeline_mode<synchronous>, transform_indices = @transform_8, window_bounds = array<i64: 1, 96>}, {pipeline_mode = #tpu.pipeline_mode<synchronous>, transform_indices = @transform_9, window_bounds = array<i64: 32, 96>}, {pipeline_mode = #tpu.pipeline_mode<synchronous>, transform_indices = @transform_10, window_bounds = array<i64: 1, 96>}, {pipeline_mode = #tpu.pipeline_mode<synchronous>, transform_indices = @transform_11, window_bounds = array<i64: 32, 16>}, {pipeline_mode = #tpu.pipeline_mode<synchronous>, transform_indices = @transform_12, window_bounds = array<i64: 8, 16>}, {pipeline_mode = #tpu.pipeline_mode<synchronous>, transform_indices = @transform_13, window_bounds = array<i64: 1, 16>}, {transform_indices = @transform_14, window_bounds = array<i64: 8, 32>}, {transform_indices = @transform_15, window_bounds = array<i64: 8, 32>}]} {
    %c0 = arith.constant 0 : index
    %c0_0 = arith.constant 0 : index
    %0 = vector.load %arg3[%c0, %c0_0] : memref<8x32xf32, #tpu.memory_space<vmem>>, vector<8x32xf32>
    %c0_1 = arith.constant 0 : index
    %c0_2 = arith.constant 0 : index
    %1 = vector.load %arg4[%c0_1, %c0_2] : memref<8x1xf32, #tpu.memory_space<vmem>>, vector<8x1xf32>
    %c0_3 = arith.constant 0 : index
    %c0_4 = arith.constant 0 : index
    %2 = vector.load %arg5[%c0_3, %c0_4] : memref<8x8xf32, #tpu.memory_space<vmem>>, vector<8x8xf32>
    %c0_5 = arith.constant 0 : index
    %c0_6 = arith.constant 0 : index
    %3 = vector.load %arg1[%c0_5, %c0_6] : memref<8x1024xbf16, #tpu.memory_space<vmem>>, vector<8x1024xbf16>
    %c0_7 = arith.constant 0 : index
    %c0_8 = arith.constant 0 : index
    %4 = vector.load %arg6[%c0_7, %c0_8] : memref<1024x32xbf16, #tpu.memory_space<vmem>>, vector<1024x32xbf16>
    %cst = arith.constant dense<0.000000e+00> : vector<8x32xf32>
    %5 = tpu.matmul %3, %4, %cst {dimension_numbers = #tpu.dot_dimension_numbers<[1], [0], [0], [1], [0, 0, 1, 1], [], []>} : vector<8x1024xbf16>, vector<1024x32xbf16>, vector<8x32xf32> -> vector<8x32xf32>
    %c0_9 = arith.constant 0 : index
    %c0_10 = arith.constant 0 : index
    %6 = vector.load %arg7[%c0_9, %c0_10] : memref<1x32xf32, #tpu.memory_space<vmem>>, vector<1x32xf32>
    %7 = vector.broadcast %6 : vector<1x32xf32> to vector<8x32xf32>
    %8 = arith.addf %5, %7 : vector<8x32xf32>
    %9 = math.tanh %8 : vector<8x32xf32>
    %10 = vector.broadcast %1 : vector<8x1xf32> to vector<8x32xf32>
    %11 = arith.mulf %0, %10 : vector<8x32xf32>
    %12 = arith.truncf %9 : vector<8x32xf32> to vector<8x32xbf16>
    %c0_11 = arith.constant 0 : index
    %c0_12 = arith.constant 0 : index
    %13 = vector.load %arg8[%c0_11, %c0_12] : memref<32x96xbf16, #tpu.memory_space<vmem>>, vector<32x96xbf16>
    %cst_13 = arith.constant dense<0.000000e+00> : vector<8x96xf32>
    %14 = tpu.matmul %12, %13, %cst_13 {dimension_numbers = #tpu.dot_dimension_numbers<[1], [0], [0], [1], [0, 0, 1, 1], [], []>} : vector<8x32xbf16>, vector<32x96xbf16>, vector<8x96xf32> -> vector<8x96xf32>
    %c0_14 = arith.constant 0 : index
    %c0_15 = arith.constant 0 : index
    %15 = vector.load %arg9[%c0_14, %c0_15] : memref<1x96xf32, #tpu.memory_space<vmem>>, vector<1x96xf32>
    %16 = vector.broadcast %15 : vector<1x96xf32> to vector<8x96xf32>
    %17 = arith.addf %14, %16 : vector<8x96xf32>
    %18 = arith.truncf %11 : vector<8x32xf32> to vector<8x32xbf16>
    %c0_16 = arith.constant 0 : index
    %c0_17 = arith.constant 0 : index
    %19 = vector.load %arg10[%c0_16, %c0_17] : memref<32x96xbf16, #tpu.memory_space<vmem>>, vector<32x96xbf16>
    %cst_18 = arith.constant dense<0.000000e+00> : vector<8x96xf32>
    %20 = tpu.matmul %18, %19, %cst_18 {dimension_numbers = #tpu.dot_dimension_numbers<[1], [0], [0], [1], [0, 0, 1, 1], [], []>} : vector<8x32xbf16>, vector<32x96xbf16>, vector<8x96xf32> -> vector<8x96xf32>
    %c0_19 = arith.constant 0 : index
    %c0_20 = arith.constant 0 : index
    %21 = vector.load %arg11[%c0_19, %c0_20] : memref<1x96xf32, #tpu.memory_space<vmem>>, vector<1x96xf32>
    %22 = vector.broadcast %21 : vector<1x96xf32> to vector<8x96xf32>
    %23 = arith.addf %20, %22 : vector<8x96xf32>
    %24 = vector.extract_strided_slice %17 {offsets = [0, 0], sizes = [8, 32], strides = [1, 1]} : vector<8x96xf32> to vector<8x32xf32>
    %25 = vector.extract_strided_slice %23 {offsets = [0, 0], sizes = [8, 32], strides = [1, 1]} : vector<8x96xf32> to vector<8x32xf32>
    %26 = arith.addf %24, %25 : vector<8x32xf32>
    %27 = arith.negf %26 : vector<8x32xf32>
    %28 = math.exp %27 : vector<8x32xf32>
    %cst_21 = arith.constant 1.000000e+00 : f32
    %29 = vector.broadcast %cst_21 : f32 to vector<8x32xf32>
    %30 = arith.addf %29, %28 : vector<8x32xf32>
    %31 = arith.divf %29, %30 : vector<8x32xf32>
    %32 = vector.extract_strided_slice %17 {offsets = [0, 32], sizes = [8, 32], strides = [1, 1]} : vector<8x96xf32> to vector<8x32xf32>
    %33 = vector.extract_strided_slice %23 {offsets = [0, 32], sizes = [8, 32], strides = [1, 1]} : vector<8x96xf32> to vector<8x32xf32>
    %34 = arith.addf %32, %33 : vector<8x32xf32>
    %35 = arith.negf %34 : vector<8x32xf32>
    %36 = math.exp %35 : vector<8x32xf32>
    %cst_22 = arith.constant 1.000000e+00 : f32
    %37 = vector.broadcast %cst_22 : f32 to vector<8x32xf32>
    %38 = arith.addf %37, %36 : vector<8x32xf32>
    %39 = arith.divf %37, %38 : vector<8x32xf32>
    %40 = vector.extract_strided_slice %17 {offsets = [0, 64], sizes = [8, 32], strides = [1, 1]} : vector<8x96xf32> to vector<8x32xf32>
    %41 = vector.extract_strided_slice %23 {offsets = [0, 64], sizes = [8, 32], strides = [1, 1]} : vector<8x96xf32> to vector<8x32xf32>
    %42 = arith.mulf %31, %41 : vector<8x32xf32>
    %43 = arith.addf %40, %42 : vector<8x32xf32>
    %44 = math.tanh %43 : vector<8x32xf32>
    %cst_23 = arith.constant 1.000000e+00 : f32
    %45 = vector.broadcast %cst_23 : f32 to vector<8x32xf32>
    %46 = arith.subf %45, %39 : vector<8x32xf32>
    %47 = arith.mulf %46, %44 : vector<8x32xf32>
    %48 = arith.mulf %39, %11 : vector<8x32xf32>
    %49 = arith.addf %47, %48 : vector<8x32xf32>
    %50 = arith.truncf %49 : vector<8x32xf32> to vector<8x32xbf16>
    %c0_24 = arith.constant 0 : index
    %c0_25 = arith.constant 0 : index
    %51 = vector.load %arg12[%c0_24, %c0_25] : memref<32x16xbf16, #tpu.memory_space<vmem>>, vector<32x16xbf16>
    %cst_26 = arith.constant dense<0.000000e+00> : vector<8x16xf32>
    %52 = tpu.matmul %50, %51, %cst_26 {dimension_numbers = #tpu.dot_dimension_numbers<[1], [0], [0], [1], [0, 0, 1, 1], [], []>} : vector<8x32xbf16>, vector<32x16xbf16>, vector<8x16xf32> -> vector<8x16xf32>
    %c0_27 = arith.constant 0 : index
    %c0_28 = arith.constant 0 : index
    %53 = vector.load %arg2[%c0_27, %c0_28] : memref<8x8xbf16, #tpu.memory_space<vmem>>, vector<8x8xbf16>
    %c0_29 = arith.constant 0 : index
    %c0_30 = arith.constant 0 : index
    %54 = vector.load %arg13[%c0_29, %c0_30] : memref<8x16xbf16, #tpu.memory_space<vmem>>, vector<8x16xbf16>
    %cst_31 = arith.constant dense<0.000000e+00> : vector<8x16xf32>
    %55 = tpu.matmul %53, %54, %cst_31 {dimension_numbers = #tpu.dot_dimension_numbers<[1], [0], [0], [1], [0, 0, 1, 1], [], []>} : vector<8x8xbf16>, vector<8x16xbf16>, vector<8x16xf32> -> vector<8x16xf32>
    %56 = arith.addf %52, %55 : vector<8x16xf32>
    %c0_32 = arith.constant 0 : index
    %c0_33 = arith.constant 0 : index
    %57 = vector.load %arg14[%c0_32, %c0_33] : memref<1x16xf32, #tpu.memory_space<vmem>>, vector<1x16xf32>
    %58 = vector.broadcast %57 : vector<1x16xf32> to vector<8x16xf32>
    %59 = arith.addf %56, %58 : vector<8x16xf32>
    %60 = vector.extract_strided_slice %59 {offsets = [0, 0], sizes = [8, 8], strides = [1, 1]} : vector<8x16xf32> to vector<8x8xf32>
    %61 = vector.extract_strided_slice %59 {offsets = [0, 8], sizes = [8, 8], strides = [1, 1]} : vector<8x16xf32> to vector<8x8xf32>
    %cst_34 = arith.constant 0.000000e+00 : f32
    %62 = vector.broadcast %cst_34 : f32 to vector<8x8xf32>
    %63 = arith.maximumf %61, %62 : vector<8x8xf32>
    %64 = math.absf %61 : vector<8x8xf32>
    %cst_35 = arith.constant 0.000000e+00 : f32
    %65 = vector.broadcast %cst_35 : f32 to vector<8x8xf32>
    %66 = arith.subf %65, %64 : vector<8x8xf32>
    %67 = math.exp %66 : vector<8x8xf32>
    %68 = math.log1p %67 : vector<8x8xf32>
    %69 = arith.addf %63, %68 : vector<8x8xf32>
    %cst_36 = arith.constant 2.000000e+00 : f32
    %70 = vector.broadcast %cst_36 : f32 to vector<8x8xf32>
    %71 = arith.minimumf %69, %70 : vector<8x8xf32>
    %72 = arith.mulf %71, %2 : vector<8x8xf32>
    %73 = arith.addf %60, %72 : vector<8x8xf32>
    %74 = arith.mulf %2, %2 : vector<8x8xf32>
    %cst_37 = arith.constant -5.000000e-01 : f32
    %75 = vector.broadcast %cst_37 : f32 to vector<8x8xf32>
    %76 = arith.mulf %75, %74 : vector<8x8xf32>
    %77 = math.log %71 : vector<8x8xf32>
    %78 = arith.subf %76, %77 : vector<8x8xf32>
    %cst_38 = arith.constant 0.918938517 : f32
    %79 = vector.broadcast %cst_38 : f32 to vector<8x8xf32>
    %80 = arith.subf %78, %79 : vector<8x8xf32>
    %81 = tpu.concatenate %73, %80, %60, %71 in 1 : vector<8x8xf32>, vector<8x8xf32>, vector<8x8xf32>, vector<8x8xf32> -> vector<8x32xf32>
    %c0_39 = arith.constant 0 : index
    %c0_40 = arith.constant 0 : index
    %82 = vector.load %arg15[%c0_39, %c0_40] : memref<8x32xf32, #tpu.memory_space<vmem>>, vector<8x32xf32>
    tpu.vector_store %arg15[%c0_39, %c0_40], %81 {strides = array<i32>} : memref<8x32xf32, #tpu.memory_space<vmem>>, vector<8x32xf32>,
    %c0_41 = arith.constant 0 : index
    %c0_42 = arith.constant 0 : index
    %83 = vector.load %arg16[%c0_41, %c0_42] : memref<8x32xf32, #tpu.memory_space<vmem>>, vector<8x32xf32>
    tpu.vector_store %arg16[%c0_41, %c0_42], %49 {strides = array<i32>} : memref<8x32xf32, #tpu.memory_space<vmem>>, vector<8x32xf32>,
    return
  }
  func.func @transform_0(%arg0: i32) -> (i32, i32) {
    %c0_i32 = arith.constant 0 : i32
    %c0_i32_0 = arith.constant 0 : i32
    return %arg0, %c0_i32 : i32, i32
  }
  func.func @transform_1(%arg0: i32) -> (i32, i32) {
    %c0_i32 = arith.constant 0 : i32
    %c0_i32_0 = arith.constant 0 : i32
    return %arg0, %c0_i32 : i32, i32
  }
  func.func @transform_2(%arg0: i32) -> (i32, i32) {
    %c0_i32 = arith.constant 0 : i32
    %c0_i32_0 = arith.constant 0 : i32
    return %arg0, %c0_i32 : i32, i32
  }
  func.func @transform_3(%arg0: i32) -> (i32, i32) {
    %c0_i32 = arith.constant 0 : i32
    %c0_i32_0 = arith.constant 0 : i32
    return %arg0, %c0_i32 : i32, i32
  }
  func.func @transform_4(%arg0: i32) -> (i32, i32) {
    %c0_i32 = arith.constant 0 : i32
    %c0_i32_0 = arith.constant 0 : i32
    return %arg0, %c0_i32 : i32, i32
  }
  func.func @transform_5(%arg0: i32) -> (i32, i32) {
    %c0_i32 = arith.constant 0 : i32
    %c0_i32_0 = arith.constant 0 : i32
    %c0_i32_1 = arith.constant 0 : i32
    return %c0_i32, %c0_i32_0 : i32, i32
  }
  func.func @transform_6(%arg0: i32) -> (i32, i32) {
    %c0_i32 = arith.constant 0 : i32
    %c0_i32_0 = arith.constant 0 : i32
    %c0_i32_1 = arith.constant 0 : i32
    return %c0_i32, %c0_i32_0 : i32, i32
  }
  func.func @transform_7(%arg0: i32) -> (i32, i32) {
    %c0_i32 = arith.constant 0 : i32
    %c0_i32_0 = arith.constant 0 : i32
    %c0_i32_1 = arith.constant 0 : i32
    return %c0_i32, %c0_i32_0 : i32, i32
  }
  func.func @transform_8(%arg0: i32) -> (i32, i32) {
    %c0_i32 = arith.constant 0 : i32
    %c0_i32_0 = arith.constant 0 : i32
    %c0_i32_1 = arith.constant 0 : i32
    return %c0_i32, %c0_i32_0 : i32, i32
  }
  func.func @transform_9(%arg0: i32) -> (i32, i32) {
    %c0_i32 = arith.constant 0 : i32
    %c0_i32_0 = arith.constant 0 : i32
    %c0_i32_1 = arith.constant 0 : i32
    return %c0_i32, %c0_i32_0 : i32, i32
  }
  func.func @transform_10(%arg0: i32) -> (i32, i32) {
    %c0_i32 = arith.constant 0 : i32
    %c0_i32_0 = arith.constant 0 : i32
    %c0_i32_1 = arith.constant 0 : i32
    return %c0_i32, %c0_i32_0 : i32, i32
  }
  func.func @transform_11(%arg0: i32) -> (i32, i32) {
    %c0_i32 = arith.constant 0 : i32
    %c0_i32_0 = arith.constant 0 : i32
    %c0_i32_1 = arith.constant 0 : i32
    return %c0_i32, %c0_i32_0 : i32, i32
  }
  func.func @transform_12(%arg0: i32) -> (i32, i32) {
    %c0_i32 = arith.constant 0 : i32
    %c0_i32_0 = arith.constant 0 : i32
    %c0_i32_1 = arith.constant 0 : i32
    return %c0_i32, %c0_i32_0 : i32, i32
  }
  func.func @transform_13(%arg0: i32) -> (i32, i32) {
    %c0_i32 = arith.constant 0 : i32
    %c0_i32_0 = arith.constant 0 : i32
    %c0_i32_1 = arith.constant 0 : i32
    return %c0_i32, %c0_i32_0 : i32, i32
  }
  func.func @transform_14(%arg0: i32) -> (i32, i32) {
    %c0_i32 = arith.constant 0 : i32
    %c0_i32_0 = arith.constant 0 : i32
    return %arg0, %c0_i32 : i32, i32
  }
  func.func @transform_15(%arg0: i32) -> (i32, i32) {
    %c0_i32 = arith.constant 0 : i32
    %c0_i32_0 = arith.constant 0 : i32
    return %arg0, %c0_i32 : i32, i32
  }
}

</mosaic_0001>

<llo_original>
// kernel: tpu_custom_call.1
$region0: #{tpu_custom_call.1}
  #allocation0 [shape = 'u32[]', space=smem, size = 0x4, offset = 0x4, fixed_abs, tag = 'smem constant byte address 0x4 - core index']
  #allocation1 [shape = 'u32[144,128]{1,0:T(1,128)}', space=vmem, size = 0x12000, scoped, tag = 'internal scratch']
  %s0 = inlined_call_operand.vmem [shape: bf16[8,1024], index: 0, kind: input, shape index: {}]
  %s1 = inlined_call_operand.vmem [shape: bf16[8,8], index: 1, kind: input, shape index: {}]
  %s2 = inlined_call_operand.hbm [shape: f32[8,32], index: 2, kind: input, shape index: {}, may-alias: {2,15}]
  %s3 = inlined_call_operand.vmem [shape: f32[8,1], index: 3, kind: input, shape index: {}]
  %s4 = inlined_call_operand.vmem [shape: f32[8,8], index: 4, kind: input, shape index: {}]
  %s5 = inlined_call_operand.vmem [shape: bf16[1024,32], index: 5, kind: input, shape index: {}]
  %s6 = inlined_call_operand.vmem [shape: f32[1,32], index: 6, kind: input, shape index: {}]
  %s7 = inlined_call_operand.vmem [shape: bf16[32,96], index: 7, kind: input, shape index: {}]
  %s8 = inlined_call_operand.vmem [shape: f32[1,96], index: 8, kind: input, shape index: {}]
  %s9 = inlined_call_operand.vmem [shape: bf16[32,96], index: 9, kind: input, shape index: {}]
  %s10 = inlined_call_operand.vmem [shape: f32[1,96], index: 10, kind: input, shape index: {}]
  %s11 = inlined_call_operand.vmem [shape: bf16[32,16], index: 11, kind: input, shape index: {}]
  %s12 = inlined_call_operand.vmem [shape: bf16[8,16], index: 12, kind: input, shape index: {}]
  %s13 = inlined_call_operand.vmem [shape: f32[1,16], index: 13, kind: input, shape index: {}]
  %s14 = inlined_call_operand.hbm [shape: f32[8,32], index: 14, kind: output, shape index: {0}]
  %s15 = inlined_call_operand.hbm [shape: f32[8,32], index: 15, kind: output, shape index: {1}, may-alias: {2,15}]
  %16 = xla_tuple %s14, %s15
  %s17 = sld [smem:[#allocation0]]
  $region78: #{tpu_custom_call.1} parent=0
    _
  %s19 = ssub.s32 1, %s17
  %s20 = scalar_select 0, %s19, %s17
  $region1: #{tpu_custom_call.1} parent=0
    #allocation2 [shape = 'u8[4096]{0}', space=vmem, size = 0x1000, scoped, tag = 'input window, operand 2, single buffered']
    #allocation3 [shape = 's32[1]{0}', space=sflag, size = 0x4, scoped, tag = 'scoped memory for tpu_custom_call.1']
    #allocation4 [shape = 's32[1]{0}', space=sflag, size = 0x4, scoped, tag = 'scoped memory for tpu_custom_call.1']
    #allocation5 [shape = 'u8[4096]{0}', space=vmem, size = 0x1000, scoped, tag = 'output window, operand 0, single buffered']
    #allocation6 [shape = 'u8[4096]{0}', space=vmem, size = 0x1000, scoped, tag = 'output window, operand 1, single buffered']
    #allocation7 [shape = 's32[1]{0}', space=sflag, size = 0x4, scoped, tag = 'scoped memory for tpu_custom_call.1']
    %21 = vsyncpa [#allocation3], 0
    %22 = vsyncpa [#allocation4], 0
    %23 = vsyncpa [#allocation7], 0
    // Predicated region
    $region2: #{tpu_custom_call.1} parent=1 // pred_check
      _
    $region3: #{tpu_custom_call.1} parent=1 // pred_check_branch
      %25 = sbr.rel (0) target = $region5
    $region4: #{tpu_custom_call.1} parent=1 // pred_region
      _
    $region5: #{tpu_custom_call.1} parent=1 // pred_fallthru
      _
    // Predicated region
    $region6: #{tpu_custom_call.1} parent=1 // pred_check
      _
    $region7: #{tpu_custom_call.1} parent=1 // pred_check_branch
      %27 = sbr.rel (0) target = $region9
    $region8: #{tpu_custom_call.1} parent=1 // pred_region
      _
    $region9: #{tpu_custom_call.1} parent=1 // pred_fallthru
      _
    // Predicated region
    $region10: #{tpu_custom_call.1} parent=1 // pred_check
      _
    $region11: #{tpu_custom_call.1} parent=1 // pred_check_branch
      %29 = sbr.rel (0) target = $region13
    $region12: #{tpu_custom_call.1} parent=1 // pred_region
      %s31 = ssub.s32 128, 128
      %32 = vsyncadd [#allocation3], %s31
      %s34 = sshll.u32 [#allocation2], 4
      %s35 = int_to_ptr.vmem [resolvable:$true] %s34
      %37 = dma.hbm_to_vmem [thread:$0]  %s2, 128, %s35, [#allocation3]
    $region13: #{tpu_custom_call.1} parent=1 // pred_fallthru
      _
    // Predicated region
    $region14: #{tpu_custom_call.1} parent=1 // pred_check
      _
    $region15: #{tpu_custom_call.1} parent=1 // pred_check_branch
      %39 = sbr.rel (0) target = $region17
    $region16: #{tpu_custom_call.1} parent=1 // pred_region
      _
    $region17: #{tpu_custom_call.1} parent=1 // pred_fallthru
      _
    // Predicated region
    $region18: #{tpu_custom_call.1} parent=1 // pred_check
      _
    $region19: #{tpu_custom_call.1} parent=1 // pred_check_branch
      %41 = sbr.rel (0) target = $region21
    $region20: #{tpu_custom_call.1} parent=1 // pred_region
      _
    $region21: #{tpu_custom_call.1} parent=1 // pred_fallthru
      _
    // Predicated region
    $region22: #{tpu_custom_call.1} parent=1 // pred_check
      _
    $region23: #{tpu_custom_call.1} parent=1 // pred_check_branch
      %43 = sbr.rel (0) target = $region25
    $region24: #{tpu_custom_call.1} parent=1 // pred_region
      _
    $region25: #{tpu_custom_call.1} parent=1 // pred_fallthru
      _
    // Predicated region
    $region26: #{tpu_custom_call.1} parent=1 // pred_check
      _
    $region27: #{tpu_custom_call.1} parent=1 // pred_check_branch
      %45 = sbr.rel (0) target = $region29
    $region28: #{tpu_custom_call.1} parent=1 // pred_region
      _
    $region29: #{tpu_custom_call.1} parent=1 // pred_fallthru
      _
    // Predicated region
    $region30: #{tpu_custom_call.1} parent=1 // pred_check
      _
    $region31: #{tpu_custom_call.1} parent=1 // pred_check_branch
      %47 = sbr.rel (0) target = $region33
    $region32: #{tpu_custom_call.1} parent=1 // pred_region
      _
    $region33: #{tpu_custom_call.1} parent=1 // pred_fallthru
      _
    // Predicated region
    $region34: #{tpu_custom_call.1} parent=1 // pred_check
      _
    $region35: #{tpu_custom_call.1} parent=1 // pred_check_branch
      %49 = sbr.rel (0) target = $region37
    $region36: #{tpu_custom_call.1} parent=1 // pred_region
      _
    $region37: #{tpu_custom_call.1} parent=1 // pred_fallthru
      _
    // Predicated region
    $region38: #{tpu_custom_call.1} parent=1 // pred_check
      _
    $region39: #{tpu_custom_call.1} parent=1 // pred_check_branch
      %51 = sbr.rel (0) target = $region41
    $region40: #{tpu_custom_call.1} parent=1 // pred_region
      _
    $region41: #{tpu_custom_call.1} parent=1 // pred_fallthru
      _
    // Predicated region
    $region42: #{tpu_custom_call.1} parent=1 // pred_check
      _
    $region43: #{tpu_custom_call.1} parent=1 // pred_check_branch
      %53 = sbr.rel (0) target = $region45
    $region44: #{tpu_custom_call.1} parent=1 // pred_region
      _
    $region45: #{tpu_custom_call.1} parent=1 // pred_fallthru
      _
    // Predicated region
    $region46: #{tpu_custom_call.1} parent=1 // pred_check
      _
    $region47: #{tpu_custom_call.1} parent=1 // pred_check_branch
      %55 = sbr.rel (0) target = $region49
    $region48: #{tpu_custom_call.1} parent=1 // pred_region
      _
    $region49: #{tpu_custom_call.1} parent=1 // pred_fallthru
      _
    // Predicated region
    $region50: #{tpu_custom_call.1} parent=1 // pred_check
      _
    $region51: #{tpu_custom_call.1} parent=1 // pred_check_branch
      %57 = sbr.rel (0) target = $region53
    $region52: #{tpu_custom_call.1} parent=1 // pred_region
      _
    $region53: #{tpu_custom_call.1} parent=1 // pred_fallthru
      _
    // Predicated region
    $region54: #{tpu_custom_call.1} parent=1 // pred_check
      _
    $region55: #{tpu_custom_call.1} parent=1 // pred_check_branch
      %59 = sbr.rel (0) target = $region57
    $region56: #{tpu_custom_call.1} parent=1 // pred_region
      _
    $region57: #{tpu_custom_call.1} parent=1 // pred_fallthru
      _
    // Predicated region
    $region58: #{tpu_custom_call.1} parent=1 // pred_check
      _
    $region59: #{tpu_custom_call.1} parent=1 // pred_check_branch
      %61 = sbr.rel (0) target = $region61
    $region60: #{tpu_custom_call.1} parent=1 // pred_region
      %62 = dma.done [#allocation3], 128
    $region61: #{tpu_custom_call.1} parent=1 // pred_fallthru
      _
    %v64 = vld [vmem:[#allocation2] sm:$0xff]
    %v65 = vld [vmem:[%s3] sm:$0xff]
    %v66 = vld [vmem:[%s4] sm:$0xff]
    %v67 = vld [vmem:[%s0] sm:$0xff]
    %v68 = vld [vmem:[%s0 + $0x8] sm:$0xff]
    %v69 = vld [vmem:[%s0 + $0x10] sm:$0xff]
    %v70 = vld [vmem:[%s0 + $0x18] sm:$0xff]
    %v71 = vld [vmem:[%s5] sm:$0xf]
    %v72 = vld [vmem:[%s5 + $0x4] sm:$0xf]
    %v73 = vld [vmem:[%s5 + $0x8] sm:$0xf]
    %v74 = vld [vmem:[%s5 + $0xc] sm:$0xf]
    %v75 = vld [vmem:[%s5 + $0x10] sm:$0xf]
    %v76 = vld [vmem:[%s5 + $0x14] sm:$0xf]
    %v77 = vld [vmem:[%s5 + $0x18] sm:$0xf]
    %v78 = vld [vmem:[%s5 + $0x1c] sm:$0xf]
    %v79 = vld [vmem:[%s5 + $0x20] sm:$0xf]
    %v80 = vld [vmem:[%s5 + $0x24] sm:$0xf]
    %v81 = vld [vmem:[%s5 + $0x28] sm:$0xf]
    %v82 = vld [vmem:[%s5 + $0x2c] sm:$0xf]
    %v83 = vld [vmem:[%s5 + $0x30] sm:$0xf]
    %v84 = vld [vmem:[%s5 + $0x34] sm:$0xf]
    %v85 = vld [vmem:[%s5 + $0x38] sm:$0xf]
    %v86 = vld [vmem:[%s5 + $0x3c] sm:$0xf]
    %v87 = vld [vmem:[%s5 + $0x40] sm:$0xf]
    %v88 = vld [vmem:[%s5 + $0x44] sm:$0xf]
    %v89 = vld [vmem:[%s5 + $0x48] sm:$0xf]
    %v90 = vld [vmem:[%s5 + $0x4c] sm:$0xf]
    %v91 = vld [vmem:[%s5 + $0x50] sm:$0xf]
    %v92 = vld [vmem:[%s5 + $0x54] sm:$0xf]
    %v93 = vld [vmem:[%s5 + $0x58] sm:$0xf]
    %v94 = vld [vmem:[%s5 + $0x5c] sm:$0xf]
    %v95 = vld [vmem:[%s5 + $0x60] sm:$0xf]
    %v96 = vld [vmem:[%s5 + $0x64] sm:$0xf]
    %v97 = vld [vmem:[%s5 + $0x68] sm:$0xf]
    %v98 = vld [vmem:[%s5 + $0x6c] sm:$0xf]
    %v99 = vld [vmem:[%s5 + $0x70] sm:$0xf]
    %v100 = vld [vmem:[%s5 + $0x74] sm:$0xf]
    %v101 = vld [vmem:[%s5 + $0x78] sm:$0xf]
    %v102 = vld [vmem:[%s5 + $0x7c] sm:$0xf]
    %v103 = vld [vmem:[%s5 + $0x80] sm:$0xf]
    %v104 = vld [vmem:[%s5 + $0x84] sm:$0xf]
    %v105 = vld [vmem:[%s5 + $0x88] sm:$0xf]
    %v106 = vld [vmem:[%s5 + $0x8c] sm:$0xf]
    %v107 = vld [vmem:[%s5 + $0x90] sm:$0xf]
    %v108 = vld [vmem:[%s5 + $0x94] sm:$0xf]
    %v109 = vld [vmem:[%s5 + $0x98] sm:$0xf]
    %v110 = vld [vmem:[%s5 + $0x9c] sm:$0xf]
    %v111 = vld [vmem:[%s5 + $0xa0] sm:$0xf]
    %v112 = vld [vmem:[%s5 + $0xa4] sm:$0xf]
    %v113 = vld [vmem:[%s5 + $0xa8] sm:$0xf]
    %v114 = vld [vmem:[%s5 + $0xac] sm:$0xf]
    %v115 = vld [vmem:[%s5 + $0xb0] sm:$0xf]
    %v116 = vld [vmem:[%s5 + $0xb4] sm:$0xf]
    %v117 = vld [vmem:[%s5 + $0xb8] sm:$0xf]
    %v118 = vld [vmem:[%s5 + $0xbc] sm:$0xf]
    %v119 = vld [vmem:[%s5 + $0xc0] sm:$0xf]
    %v120 = vld [vmem:[%s5 + $0xc4] sm:$0xf]
    %v121 = vld [vmem:[%s5 + $0xc8] sm:$0xf]
    %v122 = vld [vmem:[%s5 + $0xcc] sm:$0xf]
    %v123 = vld [vmem:[%s5 + $0xd0] sm:$0xf]
    %v124 = vld [vmem:[%s5 + $0xd4] sm:$0xf]
    %v125 = vld [vmem:[%s5 + $0xd8] sm:$0xf]
    %v126 = vld [vmem:[%s5 + $0xdc] sm:$0xf]
    %v127 = vld [vmem:[%s5 + $0xe0] sm:$0xf]
    %v128 = vld [vmem:[%s5 + $0xe4] sm:$0xf]
    %v129 = vld [vmem:[%s5 + $0xe8] sm:$0xf]
    %v130 = vld [vmem:[%s5 + $0xec] sm:$0xf]
    %v131 = vld [vmem:[%s5 + $0xf0] sm:$0xf]
    %v132 = vld [vmem:[%s5 + $0xf4] sm:$0xf]
    %v133 = vld [vmem:[%s5 + $0xf8] sm:$0xf]
    %v134 = vld [vmem:[%s5 + $0xfc] sm:$0xf]
    %v135 = vld [vmem:[%s5 + $0x100] sm:$0xf]
    %v136 = vld [vmem:[%s5 + $0x104] sm:$0xf]
    %v137 = vld [vmem:[%s5 + $0x108] sm:$0xf]
    %v138 = vld [vmem:[%s5 + $0x10c] sm:$0xf]
    %v139 = vld [vmem:[%s5 + $0x110] sm:$0xf]
    %v140 = vld [vmem:[%s5 + $0x114] sm:$0xf]
    %v141 = vld [vmem:[%s5 + $0x118] sm:$0xf]
    %v142 = vld [vmem:[%s5 + $0x11c] sm:$0xf]
    %v143 = vld [vmem:[%s5 + $0x120] sm:$0xf]
    %v144 = vld [vmem:[%s5 + $0x124] sm:$0xf]
    %v145 = vld [vmem:[%s5 + $0x128] sm:$0xf]
    %v146 = vld [vmem:[%s5 + $0x12c] sm:$0xf]
    %v147 = vld [vmem:[%s5 + $0x130] sm:$0xf]
    %v148 = vld [vmem:[%s5 + $0x134] sm:$0xf]
    %v149 = vld [vmem:[%s5 + $0x138] sm:$0xf]
    %v150 = vld [vmem:[%s5 + $0x13c] sm:$0xf]
    %v151 = vld [vmem:[%s5 + $0x140] sm:$0xf]
    %v152 = vld [vmem:[%s5 + $0x144] sm:$0xf]
    %v153 = vld [vmem:[%s5 + $0x148] sm:$0xf]
    %v154 = vld [vmem:[%s5 + $0x14c] sm:$0xf]
    %v155 = vld [vmem:[%s5 + $0x150] sm:$0xf]
    %v156 = vld [vmem:[%s5 + $0x154] sm:$0xf]
    %v157 = vld [vmem:[%s5 + $0x158] sm:$0xf]
    %v158 = vld [vmem:[%s5 + $0x15c] sm:$0xf]
    %v159 = vld [vmem:[%s5 + $0x160] sm:$0xf]
    %v160 = vld [vmem:[%s5 + $0x164] sm:$0xf]
    %v161 = vld [vmem:[%s5 + $0x168] sm:$0xf]
    %v162 = vld [vmem:[%s5 + $0x16c] sm:$0xf]
    %v163 = vld [vmem:[%s5 + $0x170] sm:$0xf]
    %v164 = vld [vmem:[%s5 + $0x174] sm:$0xf]
    %v165 = vld [vmem:[%s5 + $0x178] sm:$0xf]
    %v166 = vld [vmem:[%s5 + $0x17c] sm:$0xf]
    %v167 = vld [vmem:[%s5 + $0x180] sm:$0xf]
    %v168 = vld [vmem:[%s5 + $0x184] sm:$0xf]
    %v169 = vld [vmem:[%s5 + $0x188] sm:$0xf]
    %v170 = vld [vmem:[%s5 + $0x18c] sm:$0xf]
    %v171 = vld [vmem:[%s5 + $0x190] sm:$0xf]
    %v172 = vld [vmem:[%s5 + $0x194] sm:$0xf]
    %v173 = vld [vmem:[%s5 + $0x198] sm:$0xf]
    %v174 = vld [vmem:[%s5 + $0x19c] sm:$0xf]
    %v175 = vld [vmem:[%s5 + $0x1a0] sm:$0xf]
    %v176 = vld [vmem:[%s5 + $0x1a4] sm:$0xf]
    %v177 = vld [vmem:[%s5 + $0x1a8] sm:$0xf]
    %v178 = vld [vmem:[%s5 + $0x1ac] sm:$0xf]
    %v179 = vld [vmem:[%s5 + $0x1b0] sm:$0xf]
    %v180 = vld [vmem:[%s5 + $0x1b4] sm:$0xf]
    %v181 = vld [vmem:[%s5 + $0x1b8] sm:$0xf]
    %v182 = vld [vmem:[%s5 + $0x1bc] sm:$0xf]
    %v183 = vld [vmem:[%s5 + $0x1c0] sm:$0xf]
    %v184 = vld [vmem:[%s5 + $0x1c4] sm:$0xf]
    %v185 = vld [vmem:[%s5 + $0x1c8] sm:$0xf]
    %v186 = vld [vmem:[%s5 + $0x1cc] sm:$0xf]
    %v187 = vld [vmem:[%s5 + $0x1d0] sm:$0xf]
    %v188 = vld [vmem:[%s5 + $0x1d4] sm:$0xf]
    %v189 = vld [vmem:[%s5 + $0x1d8] sm:$0xf]
    %v190 = vld [vmem:[%s5 + $0x1dc] sm:$0xf]
    %v191 = vld [vmem:[%s5 + $0x1e0] sm:$0xf]
    %v192 = vld [vmem:[%s5 + $0x1e4] sm:$0xf]
    %v193 = vld [vmem:[%s5 + $0x1e8] sm:$0xf]
    %v194 = vld [vmem:[%s5 + $0x1ec] sm:$0xf]
    %v195 = vld [vmem:[%s5 + $0x1f0] sm:$0xf]
    %v196 = vld [vmem:[%s5 + $0x1f4] sm:$0xf]
    %v197 = vld [vmem:[%s5 + $0x1f8] sm:$0xf]
    %v198 = vld [vmem:[%s5 + $0x1fc] sm:$0xf]
    %v199 = vld [vmem:[%s6] sm:$0x1]
    %v201 = vlaneseq
    %v202 = vshrl.u32 %v201, 7
    %v203 = vsub.s32 0, %v202
    %v204 = vrot.slane %v199, %v203
    %v210 = vunpack.c.l.b16 %v67
    %v211 = vunpack.c.h.b16 %v67
    %v212 = vunpack.c.l.b16 %v68
    %v213 = vunpack.c.h.b16 %v68
    %v214 = vunpack.c.l.b16 %v69
    %v215 = vunpack.c.h.b16 %v69
    %v216 = vunpack.c.l.b16 %v70
    %v217 = vunpack.c.h.b16 %v70
    %v218 = vpack.c.b16 %v210, %v210
    %v219 = vpack.c.b16 %v211, %v211
    %v220 = vpack.c.b16 %v212, %v212
    %v221 = vpack.c.b16 %v213, %v213
    %v222 = vpack.c.b16 %v214, %v214
    %v223 = vpack.c.b16 %v215, %v215
    %v224 = vpack.c.b16 %v216, %v216
    %v225 = vpack.c.b16 %v217, %v217
    %v362 = vunpack.c.l.b16 %v71
    %v363 = vunpack.c.l.b16 %v72
    %v364 = vunpack.c.l.b16 %v73
    %v365 = vunpack.c.l.b16 %v74
    %v366 = vunpack.c.l.b16 %v75
    %v367 = vunpack.c.l.b16 %v76
    %v368 = vunpack.c.l.b16 %v77
    %v369 = vunpack.c.l.b16 %v78
    %v370 = vunpack.c.l.b16 %v79
    %v371 = vunpack.c.l.b16 %v80
    %v372 = vunpack.c.l.b16 %v81
    %v373 = vunpack.c.l.b16 %v82
    %v374 = vunpack.c.l.b16 %v83
    %v375 = vunpack.c.l.b16 %v84
    %v376 = vunpack.c.l.b16 %v85
    %v377 = vunpack.c.l.b16 %v86
    %v378 = vunpack.c.l.b16 %v87
    %v379 = vunpack.c.l.b16 %v88
    %v380 = vunpack.c.l.b16 %v89
    %v381 = vunpack.c.l.b16 %v90
    %v382 = vunpack.c.l.b16 %v91
    %v383 = vunpack.c.l.b16 %v92
    %v384 = vunpack.c.l.b16 %v93
    %v385 = vunpack.c.l.b16 %v94
    %v386 = vunpack.c.l.b16 %v95
    %v387 = vunpack.c.l.b16 %v96
    %v388 = vunpack.c.l.b16 %v97
    %v389 = vunpack.c.l.b16 %v98
    %v390 = vunpack.c.l.b16 %v99
    %v391 = vunpack.c.l.b16 %v100
    %v392 = vunpack.c.l.b16 %v101
    %v393 = vunpack.c.l.b16 %v102
    %v394 = vunpack.c.l.b16 %v103
    %v395 = vunpack.c.l.b16 %v104
    %v396 = vunpack.c.l.b16 %v105
    %v397 = vunpack.c.l.b16 %v106
    %v398 = vunpack.c.l.b16 %v107
    %v399 = vunpack.c.l.b16 %v108
    %v400 = vunpack.c.l.b16 %v109
    %v401 = vunpack.c.l.b16 %v110
    %v402 = vunpack.c.l.b16 %v111
    %v403 = vunpack.c.l.b16 %v112
    %v404 = vunpack.c.l.b16 %v113
    %v405 = vunpack.c.l.b16 %v114
    %v406 = vunpack.c.l.b16 %v115
    %v407 = vunpack.c.l.b16 %v116
    %v408 = vunpack.c.l.b16 %v117
    %v409 = vunpack.c.l.b16 %v118
    %v410 = vunpack.c.l.b16 %v119
    %v411 = vunpack.c.l.b16 %v120
    %v412 = vunpack.c.l.b16 %v121
    %v413 = vunpack.c.l.b16 %v122
    %v414 = vunpack.c.l.b16 %v123
    %v415 = vunpack.c.l.b16 %v124
    %v416 = vunpack.c.l.b16 %v125
    %v417 = vunpack.c.l.b16 %v126
    %v418 = vunpack.c.l.b16 %v127
    %v419 = vunpack.c.l.b16 %v128
    %v420 = vunpack.c.l.b16 %v129
    %v421 = vunpack.c.l.b16 %v130
    %v422 = vunpack.c.l.b16 %v131
    %v423 = vunpack.c.l.b16 %v132
    %v424 = vunpack.c.l.b16 %v133
    %v425 = vunpack.c.l.b16 %v134
    %v426 = vunpack.c.l.b16 %v135
    %v427 = vunpack.c.l.b16 %v136
    %v428 = vunpack.c.l.b16 %v137
    %v429 = vunpack.c.l.b16 %v138
    %v430 = vunpack.c.l.b16 %v139
    %v431 = vunpack.c.l.b16 %v140
    %v432 = vunpack.c.l.b16 %v141
    %v433 = vunpack.c.l.b16 %v142
    %v434 = vunpack.c.l.b16 %v143
    %v435 = vunpack.c.l.b16 %v144
    %v436 = vunpack.c.l.b16 %v145
    %v437 = vunpack.c.l.b16 %v146
    %v438 = vunpack.c.l.b16 %v147
    %v439 = vunpack.c.l.b16 %v148
    %v440 = vunpack.c.l.b16 %v149
    %v441 = vunpack.c.l.b16 %v150
    %v442 = vunpack.c.l.b16 %v151
    %v443 = vunpack.c.l.b16 %v152
    %v444 = vunpack.c.l.b16 %v153
    %v445 = vunpack.c.l.b16 %v154
    %v446 = vunpack.c.l.b16 %v155
    %v447 = vunpack.c.l.b16 %v156
    %v448 = vunpack.c.l.b16 %v157
    %v449 = vunpack.c.l.b16 %v158
    %v450 = vunpack.c.l.b16 %v159
    %v451 = vunpack.c.l.b16 %v160
    %v452 = vunpack.c.l.b16 %v161
    %v453 = vunpack.c.l.b16 %v162
    %v454 = vunpack.c.l.b16 %v163
    %v455 = vunpack.c.l.b16 %v164
    %v456 = vunpack.c.l.b16 %v165
    %v457 = vunpack.c.l.b16 %v166
    %v458 = vunpack.c.l.b16 %v167
    %v459 = vunpack.c.l.b16 %v168
    %v460 = vunpack.c.l.b16 %v169
    %v461 = vunpack.c.l.b16 %v170
    %v462 = vunpack.c.l.b16 %v171
    %v463 = vunpack.c.l.b16 %v172
    %v464 = vunpack.c.l.b16 %v173
    %v465 = vunpack.c.l.b16 %v174
    %v466 = vunpack.c.l.b16 %v175
    %v467 = vunpack.c.l.b16 %v176
    %v468 = vunpack.c.l.b16 %v177
    %v469 = vunpack.c.l.b16 %v178
    %v470 = vunpack.c.l.b16 %v179
    %v471 = vunpack.c.l.b16 %v180
    %v472 = vunpack.c.l.b16 %v181
    %v473 = vunpack.c.l.b16 %v182
    %v474 = vunpack.c.l.b16 %v183
    %v475 = vunpack.c.l.b16 %v184
    %v476 = vunpack.c.l.b16 %v185
    %v477 = vunpack.c.l.b16 %v186
    %v478 = vunpack.c.l.b16 %v187
    %v479 = vunpack.c.l.b16 %v188
    %v480 = vunpack.c.l.b16 %v189
    %v481 = vunpack.c.l.b16 %v190
    %v482 = vunpack.c.l.b16 %v191
    %v483 = vunpack.c.l.b16 %v192
    %v484 = vunpack.c.l.b16 %v193
    %v485 = vunpack.c.l.b16 %v194
    %v486 = vunpack.c.l.b16 %v195
    %v487 = vunpack.c.l.b16 %v196
    %v488 = vunpack.c.l.b16 %v197
    %v489 = vunpack.c.l.b16 %v198
    %v490 = vpack.c.b16 %v363, %v362
    %v491 = vpack.c.b16 %v365, %v364
    %v492 = vpack.c.b16 %v367, %v366
    %v493 = vpack.c.b16 %v369, %v368
    %v494 = vpack.c.b16 %v371, %v370
    %v495 = vpack.c.b16 %v373, %v372
    %v496 = vpack.c.b16 %v375, %v374
    %v497 = vpack.c.b16 %v377, %v376
    %v498 = vpack.c.b16 %v379, %v378
    %v499 = vpack.c.b16 %v381, %v380
    %v500 = vpack.c.b16 %v383, %v382
    %v501 = vpack.c.b16 %v385, %v384
    %v502 = vpack.c.b16 %v387, %v386
    %v503 = vpack.c.b16 %v389, %v388
    %v504 = vpack.c.b16 %v391, %v390
    %v505 = vpack.c.b16 %v393, %v392
    %v506 = vpack.c.b16 %v395, %v394
    %v507 = vpack.c.b16 %v397, %v396
    %v508 = vpack.c.b16 %v399, %v398
    %v509 = vpack.c.b16 %v401, %v400
    %v510 = vpack.c.b16 %v403, %v402
    %v511 = vpack.c.b16 %v405, %v404
    %v512 = vpack.c.b16 %v407, %v406
    %v513 = vpack.c.b16 %v409, %v408
    %v514 = vpack.c.b16 %v411, %v410
    %v515 = vpack.c.b16 %v413, %v412
    %v516 = vpack.c.b16 %v415, %v414
    %v517 = vpack.c.b16 %v417, %v416
    %v518 = vpack.c.b16 %v419, %v418
    %v519 = vpack.c.b16 %v421, %v420
    %v520 = vpack.c.b16 %v423, %v422
    %v521 = vpack.c.b16 %v425, %v424
    %v522 = vpack.c.b16 %v427, %v426
    %v523 = vpack.c.b16 %v429, %v428
    %v524 = vpack.c.b16 %v431, %v430
    %v525 = vpack.c.b16 %v433, %v432
    %v526 = vpack.c.b16 %v435, %v434
    %v527 = vpack.c.b16 %v437, %v436
    %v528 = vpack.c.b16 %v439, %v438
    %v529 = vpack.c.b16 %v441, %v440
    %v530 = vpack.c.b16 %v443, %v442
    %v531 = vpack.c.b16 %v445, %v444
    %v532 = vpack.c.b16 %v447, %v446
    %v533 = vpack.c.b16 %v449, %v448
    %v534 = vpack.c.b16 %v451, %v450
    %v535 = vpack.c.b16 %v453, %v452
    %v536 = vpack.c.b16 %v455, %v454
    %v537 = vpack.c.b16 %v457, %v456
    %v538 = vpack.c.b16 %v459, %v458
    %v539 = vpack.c.b16 %v461, %v460
    %v540 = vpack.c.b16 %v463, %v462
    %v541 = vpack.c.b16 %v465, %v464
    %v542 = vpack.c.b16 %v467, %v466
    %v543 = vpack.c.b16 %v469, %v468
    %v544 = vpack.c.b16 %v471, %v470
    %v545 = vpack.c.b16 %v473, %v472
    %v546 = vpack.c.b16 %v475, %v474
    %v547 = vpack.c.b16 %v477, %v476
    %v548 = vpack.c.b16 %v479, %v478
    %v549 = vpack.c.b16 %v481, %v480
    %v550 = vpack.c.b16 %v483, %v482
    %v551 = vpack.c.b16 %v485, %v484
    %v552 = vpack.c.b16 %v487, %v486
    %v553 = vpack.c.b16 %v489, %v488
    %618 = vmatprep.subr.bf16.mxu0 0
    %619 = vmatpush1.bf16.msra.mxu0 %v490
    %620 = vmatprep.subr.bf16.mxu0 0
    %621 = vmatpush1.bf16.msra.mxu0 %v491
    %622 = vmatprep.subr.bf16.mxu0 0
    %623 = vmatpush1.bf16.msra.mxu0 %v492
    %624 = vmatprep.subr.bf16.mxu0 0
    %625 = vmatpush1.bf16.msra.mxu0 %v493
    %626 = vmatprep.subr.bf16.mxu0 0
    %627 = vmatpush1.bf16.msra.mxu0 %v494
    %628 = vmatprep.subr.bf16.mxu0 0
    %629 = vmatpush1.bf16.msra.mxu0 %v495
    %630 = vmatprep.subr.bf16.mxu0 0
    %631 = vmatpush1.bf16.msra.mxu0 %v496
    %632 = vmatprep.subr.bf16.mxu0 0
    %633 = vmatpush1.bf16.msra.mxu0 %v497
    %634 = vmatprep.subr.bf16.mxu0 0
    %635 = vmatpush1.bf16.msra.mxu0 %v498
    %636 = vmatprep.subr.bf16.mxu0 0
    %637 = vmatpush1.bf16.msra.mxu0 %v499
    %638 = vmatprep.subr.bf16.mxu0 0
    %639 = vmatpush1.bf16.msra.mxu0 %v500
    %640 = vmatprep.subr.bf16.mxu0 0
    %641 = vmatpush1.bf16.msra.mxu0 %v501
    %642 = vmatprep.subr.bf16.mxu0 0
    %643 = vmatpush1.bf16.msra.mxu0 %v502
    %644 = vmatprep.subr.bf16.mxu0 0
    %645 = vmatpush1.bf16.msra.mxu0 %v503
    %646 = vmatprep.subr.bf16.mxu0 0
    %647 = vmatpush1.bf16.msra.mxu0 %v504
    %648 = vmatprep.subr.bf16.mxu0 0
    %649 = vmatpush1.bf16.msra.mxu0 %v505
    %650 = vmatprep.mubr.bf16.mxu0 %v219
    %651 = vmatmul.mubr.bf16.gmra.mrb[0].mxu0 %v218
    %v652 = vpop.f32.mrb[0].mxu0
    %v653 = vadd.f32 %v204, %v652
    %v654 = vpop.f32.mrb[0].mxu0
    %v655 = vpop.f32.mrb[0].mxu0
    %v656 = vpop.f32.mrb[0].mxu0
    %657 = vdwg.mxu0
    %658 = vmatprep.subr.bf16.mxu0 0
    %659 = vmatpush1.bf16.msra.mxu0 %v506
    %660 = vmatprep.subr.bf16.mxu0 0
    %661 = vmatpush1.bf16.msra.mxu0 %v507
    %662 = vmatprep.subr.bf16.mxu0 0
    %663 = vmatpush1.bf16.msra.mxu0 %v508
    %664 = vmatprep.subr.bf16.mxu0 0
    %665 = vmatpush1.bf16.msra.mxu0 %v509
    %666 = vmatprep.subr.bf16.mxu0 0
    %667 = vmatpush1.bf16.msra.mxu0 %v510
    %668 = vmatprep.subr.bf16.mxu0 0
    %669 = vmatpush1.bf16.msra.mxu0 %v511
    %670 = vmatprep.subr.bf16.mxu0 0
    %671 = vmatpush1.bf16.msra.mxu0 %v512
    %672 = vmatprep.subr.bf16.mxu0 0
    %673 = vmatpush1.bf16.msra.mxu0 %v513
    %674 = vmatprep.subr.bf16.mxu0 0
    %675 = vmatpush1.bf16.msra.mxu0 %v514
    %676 = vmatprep.subr.bf16.mxu0 0
    %677 = vmatpush1.bf16.msra.mxu0 %v515
    %678 = vmatprep.subr.bf16.mxu0 0
    %679 = vmatpush1.bf16.msra.mxu0 %v516
    %680 = vmatprep.subr.bf16.mxu0 0
    %681 = vmatpush1.bf16.msra.mxu0 %v517
    %682 = vmatprep.subr.bf16.mxu0 0
    %683 = vmatpush1.bf16.msra.mxu0 %v518
    %684 = vmatprep.subr.bf16.mxu0 0
    %685 = vmatpush1.bf16.msra.mxu0 %v519
    %686 = vmatprep.subr.bf16.mxu0 0
    %687 = vmatpush1.bf16.msra.mxu0 %v520
    %688 = vmatprep.subr.bf16.mxu0 0
    %689 = vmatpush1.bf16.msra.mxu0 %v521
    %690 = vmatprep.mubr.bf16.mxu0 %v221
    %691 = vmatmul.mubr.bf16.gmra.mrb[0].mxu0 %v220
    %v692 = vpop.f32.mrb[0].mxu0
    %v693 = vadd.f32 %v653, %v692
    %v694 = vpop.f32.mrb[0].mxu0
    %v695 = vpop.f32.mrb[0].mxu0
    %v696 = vpop.f32.mrb[0].mxu0
    %697 = vdwg.mxu0
    %698 = vmatprep.subr.bf16.mxu0 0
    %699 = vmatpush1.bf16.msra.mxu0 %v522
    %700 = vmatprep.subr.bf16.mxu0 0
    %701 = vmatpush1.bf16.msra.mxu0 %v523
    %702 = vmatprep.subr.bf16.mxu0 0
    %703 = vmatpush1.bf16.msra.mxu0 %v524
    %704 = vmatprep.subr.bf16.mxu0 0
    %705 = vmatpush1.bf16.msra.mxu0 %v525
    %706 = vmatprep.subr.bf16.mxu0 0
    %707 = vmatpush1.bf16.msra.mxu0 %v526
    %708 = vmatprep.subr.bf16.mxu0 0
    %709 = vmatpush1.bf16.msra.mxu0 %v527
    %710 = vmatprep.subr.bf16.mxu0 0
    %711 = vmatpush1.bf16.msra.mxu0 %v528
    %712 = vmatprep.subr.bf16.mxu0 0
    %713 = vmatpush1.bf16.msra.mxu0 %v529
    %714 = vmatprep.subr.bf16.mxu0 0
    %715 = vmatpush1.bf16.msra.mxu0 %v530
    %716 = vmatprep.subr.bf16.mxu0 0
    %717 = vmatpush1.bf16.msra.mxu0 %v531
    %718 = vmatprep.subr.bf16.mxu0 0
    %719 = vmatpush1.bf16.msra.mxu0 %v532
    %720 = vmatprep.subr.bf16.mxu0 0
    %721 = vmatpush1.bf16.msra.mxu0 %v533
    %722 = vmatprep.subr.bf16.mxu0 0
    %723 = vmatpush1.bf16.msra.mxu0 %v534
    %724 = vmatprep.subr.bf16.mxu0 0
    %725 = vmatpush1.bf16.msra.mxu0 %v535
    %726 = vmatprep.subr.bf16.mxu0 0
    %727 = vmatpush1.bf16.msra.mxu0 %v536
    %728 = vmatprep.subr.bf16.mxu0 0
    %729 = vmatpush1.bf16.msra.mxu0 %v537
    %730 = vmatprep.mubr.bf16.mxu0 %v223
    %731 = vmatmul.mubr.bf16.gmra.mrb[0].mxu0 %v222
    %v732 = vpop.f32.mrb[0].mxu0
    %v733 = vadd.f32 %v693, %v732
    %v734 = vpop.f32.mrb[0].mxu0
    %v735 = vpop.f32.mrb[0].mxu0
    %v736 = vpop.f32.mrb[0].mxu0
    %737 = vdwg.mxu0
    %738 = vmatprep.subr.bf16.mxu0 0
    %739 = vmatpush1.bf16.msra.mxu0 %v538
    %740 = vmatprep.subr.bf16.mxu0 0
    %741 = vmatpush1.bf16.msra.mxu0 %v539
    %742 = vmatprep.subr.bf16.mxu0 0
    %743 = vmatpush1.bf16.msra.mxu0 %v540
    %744 = vmatprep.subr.bf16.mxu0 0
    %745 = vmatpush1.bf16.msra.mxu0 %v541
    %746 = vmatprep.subr.bf16.mxu0 0
    %747 = vmatpush1.bf16.msra.mxu0 %v542
    %748 = vmatprep.subr.bf16.mxu0 0
    %749 = vmatpush1.bf16.msra.mxu0 %v543
    %750 = vmatprep.subr.bf16.mxu0 0
    %751 = vmatpush1.bf16.msra.mxu0 %v544
    %752 = vmatprep.subr.bf16.mxu0 0
    %753 = vmatpush1.bf16.msra.mxu0 %v545
    %754 = vmatprep.subr.bf16.mxu0 0
    %755 = vmatpush1.bf16.msra.mxu0 %v546
    %756 = vmatprep.subr.bf16.mxu0 0
    %757 = vmatpush1.bf16.msra.mxu0 %v547
    %758 = vmatprep.subr.bf16.mxu0 0
    %759 = vmatpush1.bf16.msra.mxu0 %v548
    %760 = vmatprep.subr.bf16.mxu0 0
    %761 = vmatpush1.bf16.msra.mxu0 %v549
    %762 = vmatprep.subr.bf16.mxu0 0
    %763 = vmatpush1.bf16.msra.mxu0 %v550
    %764 = vmatprep.subr.bf16.mxu0 0
    %765 = vmatpush1.bf16.msra.mxu0 %v551
    %766 = vmatprep.subr.bf16.mxu0 0
    %767 = vmatpush1.bf16.msra.mxu0 %v552
    %768 = vmatprep.subr.bf16.mxu0 0
    %769 = vmatpush1.bf16.msra.mxu0 %v553
    %770 = vmatprep.mubr.bf16.mxu0 %v225
    %771 = vmatmul.mubr.bf16.gmra.mrb[0].mxu0 %v224
    %v772 = vpop.f32.mrb[0].mxu0
    %v773 = vadd.f32 %v733, %v772
    %v774 = vpop.f32.mrb[0].mxu0
    %v775 = vpop.f32.mrb[0].mxu0
    %v776 = vpop.f32.mrb[0].mxu0
    %777 = vdwg.mxu0
    %v778 = vtanh.pop %v773
    %780 = vset.pattern.permute.xlu0 0
    %781 = vperm.xlu0 %780, %v65
    %v782 = vpop.permute.xlu0 %781
    %v784 = vmul.f32 %v64, %v782
    %v785 = vpack.c.bf16 %v778, %v778
    %v786 = vld [vmem:[%s7] sm:$0xf]
    %v787 = vld [vmem:[%s7 + $0x4] sm:$0xf]
    %v788 = vld [vmem:[%s7 + $0x8] sm:$0xf]
    %v789 = vld [vmem:[%s7 + $0xc] sm:$0xf]
    %v790 = vld [vmem:[%s8] sm:$0x1]
    %v792 = vlaneseq
    %v793 = vshrl.u32 %v792, 7
    %v794 = vsub.s32 0, %v793
    %v795 = vrot.slane %v790, %v794
    %v801 = vunpack.c.l.b16 %v786
    %v802 = vunpack.c.l.b16 %v787
    %v803 = vunpack.c.l.b16 %v788
    %v804 = vunpack.c.l.b16 %v789
    %v805 = vpack.c.b16 %v802, %v801
    %v806 = vpack.c.b16 %v804, %v803
    %vm809 = vcmask 261120
    %v811 = vsel %vm809, %v785, 0
    %813 = vmatprep.subr.bf16.mxu0 0
    %814 = vmatpush1.bf16.msra.mxu0 %v805
    %815 = vmatprep.subr.bf16.mxu0 0
    %816 = vmatpush1.bf16.msra.mxu0 %v806
    %817 = vmatprep.subr.bf16.mxu0 0
    %818 = vmatpush1.bf16.msra.mxu0 0
    %819 = vmatprep.subr.bf16.mxu0 0
    %820 = vmatpush1.bf16.msra.mxu0 0
    %821 = vmatprep.subr.bf16.mxu0 0
    %822 = vmatpush1.bf16.msra.mxu0 0
    %823 = vmatprep.subr.bf16.mxu0 0
    %824 = vmatpush1.bf16.msra.mxu0 0
    %825 = vmatprep.subr.bf16.mxu0 0
    %826 = vmatpush1.bf16.msra.mxu0 0
    %827 = vmatprep.subr.bf16.mxu0 0
    %828 = vmatpush1.bf16.msra.mxu0 0
    %829 = vmatprep.subr.bf16.mxu0 0
    %830 = vmatpush1.bf16.msra.mxu0 0
    %831 = vmatprep.subr.bf16.mxu0 0
    %832 = vmatpush1.bf16.msra.mxu0 0
    %833 = vmatprep.subr.bf16.mxu0 0
    %834 = vmatpush1.bf16.msra.mxu0 0
    %835 = vmatprep.subr.bf16.mxu0 0
    %836 = vmatpush1.bf16.msra.mxu0 0
    %837 = vmatprep.subr.bf16.mxu0 0
    %838 = vmatpush1.bf16.msra.mxu0 0
    %839 = vmatprep.subr.bf16.mxu0 0
    %840 = vmatpush1.bf16.msra.mxu0 0
    %841 = vmatprep.subr.bf16.mxu0 0
    %842 = vmatpush1.bf16.msra.mxu0 0
    %843 = vmatprep.subr.bf16.mxu0 0
    %844 = vmatpush1.bf16.msra.mxu0 0
    %845 = vmatprep.mubr.bf16.mxu0 0
    %846 = vmatmul.mubr.bf16.gmra.mrb[0].mxu0 %v811
    %v847 = vpop.f32.mrb[0].mxu0
    %v848 = vadd.f32 %v795, %v847
    %v849 = vpop.f32.mrb[0].mxu0
    %v850 = vpop.f32.mrb[0].mxu0
    %v851 = vpop.f32.mrb[0].mxu0
    %852 = vdwg.mxu0
    %v853 = vpack.c.bf16 %v784, %v784
    %v854 = vld [vmem:[%s9] sm:$0xf]
    %v855 = vld [vmem:[%s9 + $0x4] sm:$0xf]
    %v856 = vld [vmem:[%s9 + $0x8] sm:$0xf]
    %v857 = vld [vmem:[%s9 + $0xc] sm:$0xf]
    %v858 = vld [vmem:[%s10] sm:$0x1]
    %v860 = vlaneseq
    %v861 = vshrl.u32 %v860, 7
    %v862 = vsub.s32 0, %v861
    %v863 = vrot.slane %v858, %v862
    %v869 = vunpack.c.l.b16 %v854
    %v870 = vunpack.c.l.b16 %v855
    %v871 = vunpack.c.l.b16 %v856
    %v872 = vunpack.c.l.b16 %v857
    %v873 = vpack.c.b16 %v870, %v869
    %v874 = vpack.c.b16 %v872, %v871
    %v878 = vsel %vm809, %v853, 0
    %880 = vmatprep.subr.bf16.mxu0 0
    %881 = vmatpush1.bf16.msra.mxu0 %v873
    %882 = vmatprep.subr.bf16.mxu0 0
    %883 = vmatpush1.bf16.msra.mxu0 %v874
    %884 = vmatprep.subr.bf16.mxu0 0
    %885 = vmatpush1.bf16.msra.mxu0 0
    %886 = vmatprep.subr.bf16.mxu0 0
    %887 = vmatpush1.bf16.msra.mxu0 0
    %888 = vmatprep.subr.bf16.mxu0 0
    %889 = vmatpush1.bf16.msra.mxu0 0
    %890 = vmatprep.subr.bf16.mxu0 0
    %891 = vmatpush1.bf16.msra.mxu0 0
    %892 = vmatprep.subr.bf16.mxu0 0
    %893 = vmatpush1.bf16.msra.mxu0 0
    %894 = vmatprep.subr.bf16.mxu0 0
    %895 = vmatpush1.bf16.msra.mxu0 0
    %896 = vmatprep.subr.bf16.mxu0 0
    %897 = vmatpush1.bf16.msra.mxu0 0
    %898 = vmatprep.subr.bf16.mxu0 0
    %899 = vmatpush1.bf16.msra.mxu0 0
    %900 = vmatprep.subr.bf16.mxu0 0
    %901 = vmatpush1.bf16.msra.mxu0 0
    %902 = vmatprep.subr.bf16.mxu0 0
    %903 = vmatpush1.bf16.msra.mxu0 0
    %904 = vmatprep.subr.bf16.mxu0 0
    %905 = vmatpush1.bf16.msra.mxu0 0
    %906 = vmatprep.subr.bf16.mxu0 0
    %907 = vmatpush1.bf16.msra.mxu0 0
    %908 = vmatprep.subr.bf16.mxu0 0
    %909 = vmatpush1.bf16.msra.mxu0 0
    %910 = vmatprep.subr.bf16.mxu0 0
    %911 = vmatpush1.bf16.msra.mxu0 0
    %912 = vmatprep.mubr.bf16.mxu0 0
    %913 = vmatmul.mubr.bf16.gmra.mrb[0].mxu0 %v878
    %v914 = vpop.f32.mrb[0].mxu0
    %v915 = vadd.f32 %v863, %v914
    %v916 = vpop.f32.mrb[0].mxu0
    %v917 = vpop.f32.mrb[0].mxu0
    %v918 = vpop.f32.mrb[0].mxu0
    %919 = vdwg.mxu0
    %v920 = vadd.f32 %v848, %v915
    %v921 = vxor.u32 %v920, 2147483648
    %v922 = vmul.f32 %v921, 1.442695
    %v923 = vpow.pop %v922
    %v924 = vadd.f32 %v923, 1.0
    %v925 = vrcp.pop %v924
    %v926 = vmul.f32 1.0, %v925
    %928 = vrot.lane.b32.xlu0 %v915, 64
    %v929 = vpop.permute.xlu0 %928
    %v931 = vmul.f32 %v926, %v929
    %933 = vrot.lane.b32.xlu0 %v931, 64
    %v934 = vpop.permute.xlu0 %933
    %v936 = vadd.f32 %v848, %v934
    %v937 = vtanh.pop %v936
    %v938 = vsub.f32 1.0, %v926
    %940 = vrot.lane.b32.xlu0 %v937, 96
    %v941 = vpop.permute.xlu0 %940
    %v943 = vmul.f32 %v938, %v941
    %945 = vrot.lane.b32.xlu0 %v784, 32
    %v946 = vpop.permute.xlu0 %945
    %v948 = vmul.f32 %v926, %v946
    %v949 = vadd.f32 %v943, %v948
    %v950 = vpack.c.bf16 %v949, %v949
    %v951 = vld [vmem:[%s11] sm:$0xf]
    %v952 = vld [vmem:[%s11 + $0x4] sm:$0xf]
    %v953 = vld [vmem:[%s11 + $0x8] sm:$0xf]
    %v954 = vld [vmem:[%s11 + $0xc] sm:$0xf]
    %v955 = vld [vmem:[%s1] sm:$0xf]
    %v956 = vld [vmem:[%s12] sm:$0xf]
    %vm957 = vcmask 64512
    %v959 = vsel %vm957, %v955, 0
    %vm961 = vcmask 1043456
    %v963 = vsel %vm961, %v956, 0
    %965 = vmatprep.subr.bf16.mxu0 0
    %966 = vmatpush1.bf16.msra.mxu0 %v963
    %967 = vmatprep.subr.bf16.mxu0 0
    %968 = vmatpush1.bf16.msra.mxu0 0
    %969 = vmatprep.subr.bf16.mxu0 0
    %970 = vmatpush1.bf16.msra.mxu0 0
    %971 = vmatprep.subr.bf16.mxu0 0
    %972 = vmatpush1.bf16.msra.mxu0 0
    %973 = vmatprep.subr.bf16.mxu0 0
    %974 = vmatpush1.bf16.msra.mxu0 0
    %975 = vmatprep.subr.bf16.mxu0 0
    %976 = vmatpush1.bf16.msra.mxu0 0
    %977 = vmatprep.subr.bf16.mxu0 0
    %978 = vmatpush1.bf16.msra.mxu0 0
    %979 = vmatprep.subr.bf16.mxu0 0
    %980 = vmatpush1.bf16.msra.mxu0 0
    %981 = vmatprep.subr.bf16.mxu0 0
    %982 = vmatpush1.bf16.msra.mxu0 0
    %983 = vmatprep.subr.bf16.mxu0 0
    %984 = vmatpush1.bf16.msra.mxu0 0
    %985 = vmatprep.subr.bf16.mxu0 0
    %986 = vmatpush1.bf16.msra.mxu0 0
    %987 = vmatprep.subr.bf16.mxu0 0
    %988 = vmatpush1.bf16.msra.mxu0 0
    %989 = vmatprep.subr.bf16.mxu0 0
    %990 = vmatpush1.bf16.msra.mxu0 0
    %991 = vmatprep.subr.bf16.mxu0 0
    %992 = vmatpush1.bf16.msra.mxu0 0
    %993 = vmatprep.subr.bf16.mxu0 0
    %994 = vmatpush1.bf16.msra.mxu0 0
    %995 = vmatprep.subr.bf16.mxu0 0
    %996 = vmatpush1.bf16.msra.mxu0 0
    %997 = vmatprep.mubr.bf16.mxu0 0
    %998 = vmatmul.mubr.bf16.gmra.mrb[0].mxu0 %v959
    %v999 = vpop.f32.mrb[0].mxu0
    %v1000 = vadd.f32 0.0, %v999
    %v1001 = vpop.f32.mrb[0].mxu0
    %v1002 = vpop.f32.mrb[0].mxu0
    %v1003 = vpop.f32.mrb[0].mxu0
    %1004 = vdwg.mxu0
    %1006 = vrot.lane.b32.xlu0 %v950, 96
    %v1007 = vpop.permute.xlu0 %1006
    %v1012 = vunpack.c.l.b16 %v951
    %v1013 = vunpack.c.l.b16 %v952
    %v1014 = vunpack.c.l.b16 %v953
    %v1015 = vunpack.c.l.b16 %v954
    %v1016 = vpack.c.b16 %v1013, %v1012
    %v1017 = vpack.c.b16 %v1015, %v1014
    %v1021 = vsel %vm809, %v1007, 0
    %1023 = vmatprep.subr.bf16.mxu0 0
    %1024 = vmatpush1.bf16.msra.mxu0 %v1016
    %1025 = vmatprep.subr.bf16.mxu0 0
    %1026 = vmatpush1.bf16.msra.mxu0 %v1017
    %1027 = vmatprep.subr.bf16.mxu0 0
    %1028 = vmatpush1.bf16.msra.mxu0 0
    %1029 = vmatprep.subr.bf16.mxu0 0
    %1030 = vmatpush1.bf16.msra.mxu0 0
    %1031 = vmatprep.subr.bf16.mxu0 0
    %1032 = vmatpush1.bf16.msra.mxu0 0
    %1033 = vmatprep.subr.bf16.mxu0 0
    %1034 = vmatpush1.bf16.msra.mxu0 0
    %1035 = vmatprep.subr.bf16.mxu0 0
    %1036 = vmatpush1.bf16.msra.mxu0 0
    %1037 = vmatprep.subr.bf16.mxu0 0
    %1038 = vmatpush1.bf16.msra.mxu0 0
    %1039 = vmatprep.subr.bf16.mxu0 0
    %1040 = vmatpush1.bf16.msra.mxu0 0
    %1041 = vmatprep.subr.bf16.mxu0 0
    %1042 = vmatpush1.bf16.msra.mxu0 0
    %1043 = vmatprep.subr.bf16.mxu0 0
    %1044 = vmatpush1.bf16.msra.mxu0 0
    %1045 = vmatprep.subr.bf16.mxu0 0
    %1046 = vmatpush1.bf16.msra.mxu0 0
    %1047 = vmatprep.subr.bf16.mxu0 0
    %1048 = vmatpush1.bf16.msra.mxu0 0
    %1049 = vmatprep.subr.bf16.mxu0 0
    %1050 = vmatpush1.bf16.msra.mxu0 0
    %1051 = vmatprep.subr.bf16.mxu0 0
    %1052 = vmatpush1.bf16.msra.mxu0 0
    %1053 = vmatprep.subr.bf16.mxu0 0
    %1054 = vmatpush1.bf16.msra.mxu0 0
    %1055 = vmatprep.mubr.bf16.mxu0 0
    %1056 = vmatmul.mubr.bf16.gmra.mrb[0].mxu0 %v1021
    %v1057 = vpop.f32.mrb[0].mxu0
    %v1058 = vadd.f32 %v1000, %v1057
    %v1059 = vpop.f32.mrb[0].mxu0
    %v1060 = vpop.f32.mrb[0].mxu0
    %v1061 = vpop.f32.mrb[0].mxu0
    %1062 = vdwg.mxu0
    %v1063 = vld [vmem:[%s13] sm:$0x1]
    %v1065 = vlaneseq
    %v1066 = vshrl.u32 %v1065, 7
    %v1067 = vsub.s32 0, %v1066
    %v1068 = vrot.slane %v1063, %v1067
    %v1070 = vadd.f32 %v1058, %v1068
    %v1071 = vmax.f32 %v1070, 0.0
    %v1072 = vand.u32 2147483647, %v1070
    %v1073 = vsub.f32 0.0, %v1072
    %v1074 = vmul.f32 %v1073, 1.442695
    %v1075 = vpow.pop %v1074
    %v1076 = vadd.f32 %v1075, 1.0
    %v1077 = vlog2.pop %v1076
    %v1078 = vmul.f32 %v1077, 0.6931472
    %v1079 = vmul.f32 -0.5, %v1075
    %v1080 = vadd.f32 %v1079, 1.0
    %v1081 = vmul.f32 %v1080, %v1075
    %v1082 = vand.u32 2147483647, %v1075
    %vm1083 = vcmp.lt.f32.partialorder %v1082, 0.0004427343
    %v1084 = vsel %vm1083, %v1081, %v1078
    %v1085 = vadd.f32 %v1071, %v1084
    %v1086 = vmin.f32 %v1085, 2.0
    %1088 = vrot.lane.b32.xlu0 %v66, 8
    %v1089 = vpop.permute.xlu0 %1088
    %v1091 = vmul.f32 %v1086, %v1089
    %1093 = vrot.lane.b32.xlu0 %v1091, 120
    %v1094 = vpop.permute.xlu0 %1093
    %v1096 = vadd.f32 %v1070, %v1094
    %v1097 = vmul.f32 %v66, %v66
    %v1098 = vmul.f32 %v1097, -0.5
    %v1099 = vlog2.pop %v1086
    %v1100 = vmul.f32 %v1099, 0.6931472
    %1102 = vrot.lane.b32.xlu0 %v1100, 120
    %v1103 = vpop.permute.xlu0 %1102
    %v1105 = vsub.f32 %v1098, %v1103
    %v1106 = vsub.f32 %v1105, 0.9189385
    %1108 = vrot.lane.b32.xlu0 %v1106, 8
    %v1109 = vpop.permute.xlu0 %1108
    %1112 = vrot.lane.b32.xlu0 %v1070, 16
    %v1113 = vpop.permute.xlu0 %1112
    %1116 = vrot.lane.b32.xlu0 %v1086, 16
    %v1117 = vpop.permute.xlu0 %1116
    %v1119 = vsel %vm957, %v1096, %v1109
    %vm1120 = vcmask 130048
    %v1121 = vsel %vm1120, %v1119, %v1113
    %vm1122 = vcmask 195584
    %v1123 = vsel %vm1122, %v1121, %v1117
    %1124 = vst.msk [vmem:[#allocation5] sm:$0xff] %vm809, %v1123
    %1126 = vrot.lane.b32.xlu0 %v949, 96
    %v1127 = vpop.permute.xlu0 %1126
    %1129 = vst.msk [vmem:[#allocation6] sm:$0xff] %vm809, %v1127
    // Predicated region
    $region62: #{tpu_custom_call.1} parent=1 // pred_check
      _
    $region63: #{tpu_custom_call.1} parent=1 // pred_check_branch
      %1131 = sbr.rel (0) target = $region65
    $region64: #{tpu_custom_call.1} parent=1 // pred_region
      %s1133 = ssub.s32 128, 128
      %1134 = vsyncadd [#allocation4], %s1133
      %s1136 = sshll.u32 [#allocation5], 4
      %s1137 = int_to_ptr.vmem [resolvable:$true] %s1136
      %1139 = dma.vmem_to_hbm [thread:$0]  %s1137, 128, %s14, [#allocation4]
    $region65: #{tpu_custom_call.1} parent=1 // pred_fallthru
      _
    // Predicated region
    $region66: #{tpu_custom_call.1} parent=1 // pred_check
      _
    $region67: #{tpu_custom_call.1} parent=1 // pred_check_branch
      %1141 = sbr.rel (0) target = $region69
    $region68: #{tpu_custom_call.1} parent=1 // pred_region
      %s1143 = ssub.s32 128, 128
      %1144 = vsyncadd [#allocation7], %s1143
      %s1146 = sshll.u32 [#allocation6], 4
      %s1147 = int_to_ptr.vmem [resolvable:$true] %s1146
      %1149 = dma.vmem_to_hbm [thread:$0]  %s1147, 128, %s15, [#allocation7]
    $region69: #{tpu_custom_call.1} parent=1 // pred_fallthru
      _
    // Predicated region
    $region70: #{tpu_custom_call.1} parent=1 // pred_check
      _
    $region71: #{tpu_custom_call.1} parent=1 // pred_check_branch
      %1151 = sbr.rel (0) target = $region73
    $region72: #{tpu_custom_call.1} parent=1 // pred_region
      %1152 = dma.done [#allocation4], 128
    $region73: #{tpu_custom_call.1} parent=1 // pred_fallthru
      _
    // Predicated region
    $region74: #{tpu_custom_call.1} parent=1 // pred_check
      _
    $region75: #{tpu_custom_call.1} parent=1 // pred_check_branch
      %1154 = sbr.rel (0) target = $region77
    $region76: #{tpu_custom_call.1} parent=1 // pred_region
      %1155 = dma.done [#allocation7], 128
    $region77: #{tpu_custom_call.1} parent=1 // pred_fallthru
      _
    %1156 = vsyncpa [#allocation3], 1
    %1157 = vsyncpa [#allocation4], 1
    %1158 = vsyncpa [#allocation7], 1

</llo_original>
